<compile_context>
chip_gen: v5e
topology: v5e:2x2
jax: 0.10.0
libtpu: 0.0.40
codegen_flags: <defaults>
</compile_context>

<pallas_src>
import functools

import jax
import jax.numpy as jnp
from jax.experimental import pallas as pl
from jax.experimental.pallas import tpu as pltpu

LANE = 128      # TPU lane width  (last dim)
SUBLANE = 8     # TPU sublane width (second-to-last dim)


def _round_up(x, m):
    return (x + m - 1) // m * m


# ---------------------------------------------------------------------------
# Kernel
# ---------------------------------------------------------------------------
def _make_mlp_kernel(n_layers, compute_dtype):
    """Fused kernel: h = x; for each layer: h = relu(h @ W_l + b_l)."""

    def kernel(x_ref, *refs):
        o_ref = refs[-1]
        wb_refs = refs[:-1]          # (w0, b0, w1, b1, ...)
        h = x_ref[...].astype(jnp.float32)           # (tm, D0p) activation
        for l in range(n_layers):                    # static unroll
            w = wb_refs[2 * l][...]                  # (Dinp, Doutp) bf16
            b = wb_refs[2 * l + 1][...]              # (1,    Doutp) f32
            acc = jnp.dot(h.astype(compute_dtype), w,
                          preferred_element_type=jnp.float32)   # MXU, f32 acc
            acc = acc + b                            # VPU broadcast add (f32)
            h = jnp.maximum(acc, 0.0)                # ReLU after EVERY Linear
        o_ref[...] = h.astype(o_ref.dtype)

    return kernel


# ---------------------------------------------------------------------------
# Parameter init / padding
# ---------------------------------------------------------------------------
def init_mlp_params(key, input_dim, output_dim, hidden_dim):
    """Mirror nn.Linear default init (uniform +-1/sqrt(fan_in)), f32."""
    input_dims = [input_dim] + list(hidden_dim)
    output_dims = list(hidden_dim) + [output_dim]
    params = []
    for in_dim, out_dim in zip(input_dims, output_dims):
        key, kw, kb = jax.random.split(key, 3)
        bound = 1.0 / jnp.sqrt(jnp.float32(in_dim))
        # stored as (in_dim, out_dim) == PyTorch weight.T
        w = jax.random.uniform(kw, (in_dim, out_dim), jnp.float32, -bound, bound)
        b = jax.random.uniform(kb, (out_dim,), jnp.float32, -bound, bound)
        params.append((w, b))
    return params


def pad_params(params, compute_dtype=jnp.bfloat16):
    """Zero-pad every feature dim to a multiple of 128; weights stored bf16."""
    padded = []
    for w, b in params:
        din, dout = w.shape
        dinp, doutp = _round_up(din, LANE), _round_up(dout, LANE)
        wp = jnp.zeros((dinp, doutp), compute_dtype).at[:din, :dout].set(
            w.astype(compute_dtype))
        bp = jnp.zeros((1, doutp), jnp.float32).at[0, :dout].set(b)
        padded.append((wp, bp))
    return padded


# ---------------------------------------------------------------------------
# Fused forward pass
# ---------------------------------------------------------------------------
@functools.partial(jax.jit, static_argnames=("out_dim", "block_m", "compute_dtype"))
def mlp_forward(x, padded_params, *, out_dim, block_m=256,
                compute_dtype=jnp.bfloat16):
    batch, in_dim = x.shape
    n_layers = len(padded_params)
    din_pad = padded_params[0][0].shape[0]
    dout_pad = padded_params[-1][0].shape[1]

    # Batch tile (second-to-last dim must be a multiple of 8).
    tm = min(block_m, _round_up(batch, SUBLANE))
    m_pad = _round_up(batch, tm)

    # Zero-pad the input (rows and feature columns); exact for Linear+ReLU.
    xp = jnp.zeros((m_pad, din_pad), x.dtype).at[:batch, :in_dim].set(x)

    # Flatten params and build specs: weights/biases are grid-invariant blocks.
    flat, in_specs = [], [pl.BlockSpec((tm, din_pad), lambda i: (i, 0))]
    for w, b in padded_params:
        flat += [w, b]
        in_specs.append(pl.BlockSpec(w.shape, lambda i: (0, 0)))
        in_specs.append(pl.BlockSpec(b.shape, lambda i: (0, 0)))
    out_specs = pl.BlockSpec((tm, dout_pad), lambda i: (i, 0))

    # VMEM budget: double-buffered inputs/outputs + headroom.
    def _bytes(a):
        return a.size * a.dtype.itemsize

    per_step = (tm * din_pad * xp.dtype.itemsize
                + sum(_bytes(a) for a in flat)
                + tm * dout_pad * xp.dtype.itemsize)
    # Cap at 64 MiB (v7x physical VMEM); at real sizes reduce block_m instead.
    vmem_limit = int(min(max(2 * per_step + (4 << 20), 16 << 20), 64 << 20))

    flops = 2 * sum(m_pad * w.shape[0] * w.shape[1] for w, _ in padded_params)
    bytes_accessed = _bytes(xp) + sum(_bytes(a) for a in flat) \
        + m_pad * dout_pad * xp.dtype.itemsize
    cost = pl.CostEstimate(flops=flops, transcendentals=0,
                           bytes_accessed=bytes_accessed)

    out_padded = pl.pallas_call(
        _make_mlp_kernel(n_layers, compute_dtype),
        out_shape=jax.ShapeDtypeStruct((m_pad, dout_pad), x.dtype),
        grid=(m_pad // tm,),
        in_specs=in_specs,
        out_specs=out_specs,
        compiler_params=pltpu.CompilerParams(
            dimension_semantics=("parallel",),
            vmem_limit_bytes=vmem_limit),
        cost_estimate=cost,
    )(xp, *flat)

    return out_padded[:batch, :out_dim]


# ---------------------------------------------------------------------------
# References
# ---------------------------------------------------------------------------
def mlp_forward_ref_bf16(x, params, compute_dtype=jnp.bfloat16):
    """Same bf16-input / f32-accum numerics as the kernel (tight check)."""
    h = x
    for w, b in params:
        acc = jnp.dot(h.astype(compute_dtype), w.astype(compute_dtype),
                      preferred_element_type=jnp.float32)
        h = jnp.maximum(acc + b, 0.0)
    return h


def mlp_forward_ref_f32(x, params):
    """Pure f32 reference matching the PyTorch module semantics (loose check)."""
    h = x
    for w, b in params:
        h = jnp.maximum(h @ w + b, 0.0)
    return h


# ---------------------------------------------------------------------------
if __name__ == "__main__":
    key = jax.random.PRNGKey(0)
    kx, kp = jax.random.split(key)

    batch = 8
    input_dim = 16
    hidden_dim = [32, 32]
    output_dim = 8

    x = jax.random.normal(kx, (batch, input_dim), jnp.float32)
    params = init_mlp_params(kp, input_dim, output_dim, hidden_dim)
    padded_params = pad_params(params)          # bf16 weights, padded to 128

    out = mlp_forward(x, padded_params, out_dim=output_dim)
    out = jax.block_until_ready(out)
    assert out.shape == (batch, output_dim)

    # Tight check vs. a reference using identical bf16/f32-accum numerics.
    ref_bf16 = mlp_forward_ref_bf16(x, params)
    assert jnp.allclose(out, ref_bf16, atol=1e-5, rtol=1e-5), \
        f"max abs err vs bf16 ref: {jnp.max(jnp.abs(out - ref_bf16))}"

    # Loose check vs. the exact f32 PyTorch-equivalent forward.
    ref_f32 = mlp_forward_ref_f32(x, params)
    assert jnp.allclose(out, ref_f32, atol=5e-2, rtol=5e-2), \
        f"max abs err vs f32 ref: {jnp.max(jnp.abs(out - ref_f32))}"

    print("KERNEL_OK")
</pallas_src>

<mosaic_0001>
module attributes {stable_mosaic.version = 11 : i64} {
  func.func @kernel(%arg0: i32, %arg1: memref<8x128xf32, #tpu.memory_space<vmem>>, %arg2: memref<128x128xbf16, #tpu.memory_space<vmem>>, %arg3: memref<1x128xf32, #tpu.memory_space<vmem>>, %arg4: memref<128x128xbf16, #tpu.memory_space<vmem>>, %arg5: memref<1x128xf32, #tpu.memory_space<vmem>>, %arg6: memref<128x128xbf16, #tpu.memory_space<vmem>>, %arg7: memref<1x128xf32, #tpu.memory_space<vmem>>, %arg8: memref<8x128xf32, #tpu.memory_space<vmem>>) attributes {dimension_semantics = [#tpu.dimension_semantics<parallel>], iteration_bounds = array<i64: 1>, scalar_prefetch = 0 : i64, scratch_operands = 0 : i64, tpu.core_type = #tpu.core_type<tc>, window_params = [{transform_indices = @transform_0, window_bounds = array<i64: 8, 128>}, {pipeline_mode = #tpu.pipeline_mode<synchronous>, transform_indices = @transform_1, window_bounds = array<i64: 128, 128>}, {pipeline_mode = #tpu.pipeline_mode<synchronous>, transform_indices = @transform_2, window_bounds = array<i64: 1, 128>}, {pipeline_mode = #tpu.pipeline_mode<synchronous>, transform_indices = @transform_3, window_bounds = array<i64: 128, 128>}, {pipeline_mode = #tpu.pipeline_mode<synchronous>, transform_indices = @transform_4, window_bounds = array<i64: 1, 128>}, {pipeline_mode = #tpu.pipeline_mode<synchronous>, transform_indices = @transform_5, window_bounds = array<i64: 128, 128>}, {pipeline_mode = #tpu.pipeline_mode<synchronous>, transform_indices = @transform_6, window_bounds = array<i64: 1, 128>}, {transform_indices = @transform_7, window_bounds = array<i64: 8, 128>}]} {
    %c0 = arith.constant 0 : index
    %c0_0 = arith.constant 0 : index
    %0 = vector.load %arg1[%c0, %c0_0] : memref<8x128xf32, #tpu.memory_space<vmem>>, vector<8x128xf32>
    %c0_1 = arith.constant 0 : index
    %c0_2 = arith.constant 0 : index
    %1 = vector.load %arg2[%c0_1, %c0_2] : memref<128x128xbf16, #tpu.memory_space<vmem>>, vector<128x128xbf16>
    %c0_3 = arith.constant 0 : index
    %c0_4 = arith.constant 0 : index
    %2 = vector.load %arg3[%c0_3, %c0_4] : memref<1x128xf32, #tpu.memory_space<vmem>>, vector<1x128xf32>
    %3 = arith.truncf %0 : vector<8x128xf32> to vector<8x128xbf16>
    %cst = arith.constant dense<0.000000e+00> : vector<8x128xf32>
    %4 = tpu.matmul %3, %1, %cst {dimension_numbers = #tpu.dot_dimension_numbers<[1], [0], [0], [1], [0, 0, 1, 1], [], []>} : vector<8x128xbf16>, vector<128x128xbf16>, vector<8x128xf32> -> vector<8x128xf32>
    %5 = vector.broadcast %2 : vector<1x128xf32> to vector<8x128xf32>
    %6 = arith.addf %4, %5 : vector<8x128xf32>
    %cst_5 = arith.constant 0.000000e+00 : f32
    %7 = vector.broadcast %cst_5 : f32 to vector<8x128xf32>
    %8 = arith.maximumf %6, %7 : vector<8x128xf32>
    %c0_6 = arith.constant 0 : index
    %c0_7 = arith.constant 0 : index
    %9 = vector.load %arg4[%c0_6, %c0_7] : memref<128x128xbf16, #tpu.memory_space<vmem>>, vector<128x128xbf16>
    %c0_8 = arith.constant 0 : index
    %c0_9 = arith.constant 0 : index
    %10 = vector.load %arg5[%c0_8, %c0_9] : memref<1x128xf32, #tpu.memory_space<vmem>>, vector<1x128xf32>
    %11 = arith.truncf %8 : vector<8x128xf32> to vector<8x128xbf16>
    %cst_10 = arith.constant dense<0.000000e+00> : vector<8x128xf32>
    %12 = tpu.matmul %11, %9, %cst_10 {dimension_numbers = #tpu.dot_dimension_numbers<[1], [0], [0], [1], [0, 0, 1, 1], [], []>} : vector<8x128xbf16>, vector<128x128xbf16>, vector<8x128xf32> -> vector<8x128xf32>
    %13 = vector.broadcast %10 : vector<1x128xf32> to vector<8x128xf32>
    %14 = arith.addf %12, %13 : vector<8x128xf32>
    %cst_11 = arith.constant 0.000000e+00 : f32
    %15 = vector.broadcast %cst_11 : f32 to vector<8x128xf32>
    %16 = arith.maximumf %14, %15 : vector<8x128xf32>
    %c0_12 = arith.constant 0 : index
    %c0_13 = arith.constant 0 : index
    %17 = vector.load %arg6[%c0_12, %c0_13] : memref<128x128xbf16, #tpu.memory_space<vmem>>, vector<128x128xbf16>
    %c0_14 = arith.constant 0 : index
    %c0_15 = arith.constant 0 : index
    %18 = vector.load %arg7[%c0_14, %c0_15] : memref<1x128xf32, #tpu.memory_space<vmem>>, vector<1x128xf32>
    %19 = arith.truncf %16 : vector<8x128xf32> to vector<8x128xbf16>
    %cst_16 = arith.constant dense<0.000000e+00> : vector<8x128xf32>
    %20 = tpu.matmul %19, %17, %cst_16 {dimension_numbers = #tpu.dot_dimension_numbers<[1], [0], [0], [1], [0, 0, 1, 1], [], []>} : vector<8x128xbf16>, vector<128x128xbf16>, vector<8x128xf32> -> vector<8x128xf32>
    %21 = vector.broadcast %18 : vector<1x128xf32> to vector<8x128xf32>
    %22 = arith.addf %20, %21 : vector<8x128xf32>
    %cst_17 = arith.constant 0.000000e+00 : f32
    %23 = vector.broadcast %cst_17 : f32 to vector<8x128xf32>
    %24 = arith.maximumf %22, %23 : vector<8x128xf32>
    %c0_18 = arith.constant 0 : index
    %c0_19 = arith.constant 0 : index
    %25 = vector.load %arg8[%c0_18, %c0_19] : memref<8x128xf32, #tpu.memory_space<vmem>>, vector<8x128xf32>
    tpu.vector_store %arg8[%c0_18, %c0_19], %24 {strides = array<i32>} : memref<8x128xf32, #tpu.memory_space<vmem>>, vector<8x128xf32>,
    return
  }
  func.func @transform_0(%arg0: i32) -> (i32, i32) {
    %c0_i32 = arith.constant 0 : i32
    %c0_i32_0 = arith.constant 0 : i32
    return %arg0, %c0_i32 : i32, i32
  }
  func.func @transform_1(%arg0: i32) -> (i32, i32) {
    %c0_i32 = arith.constant 0 : i32
    %c0_i32_0 = arith.constant 0 : i32
    %c0_i32_1 = arith.constant 0 : i32
    return %c0_i32, %c0_i32_0 : i32, i32
  }
  func.func @transform_2(%arg0: i32) -> (i32, i32) {
    %c0_i32 = arith.constant 0 : i32
    %c0_i32_0 = arith.constant 0 : i32
    %c0_i32_1 = arith.constant 0 : i32
    return %c0_i32, %c0_i32_0 : i32, i32
  }
  func.func @transform_3(%arg0: i32) -> (i32, i32) {
    %c0_i32 = arith.constant 0 : i32
    %c0_i32_0 = arith.constant 0 : i32
    %c0_i32_1 = arith.constant 0 : i32
    return %c0_i32, %c0_i32_0 : i32, i32
  }
  func.func @transform_4(%arg0: i32) -> (i32, i32) {
    %c0_i32 = arith.constant 0 : i32
    %c0_i32_0 = arith.constant 0 : i32
    %c0_i32_1 = arith.constant 0 : i32
    return %c0_i32, %c0_i32_0 : i32, i32
  }
  func.func @transform_5(%arg0: i32) -> (i32, i32) {
    %c0_i32 = arith.constant 0 : i32
    %c0_i32_0 = arith.constant 0 : i32
    %c0_i32_1 = arith.constant 0 : i32
    return %c0_i32, %c0_i32_0 : i32, i32
  }
  func.func @transform_6(%arg0: i32) -> (i32, i32) {
    %c0_i32 = arith.constant 0 : i32
    %c0_i32_0 = arith.constant 0 : i32
    %c0_i32_1 = arith.constant 0 : i32
    return %c0_i32, %c0_i32_0 : i32, i32
  }
  func.func @transform_7(%arg0: i32) -> (i32, i32) {
    %c0_i32 = arith.constant 0 : i32
    %c0_i32_0 = arith.constant 0 : i32
    return %arg0, %c0_i32 : i32, i32
  }
}

</mosaic_0001>

<llo_original>
// kernel: mlp_forward.1
$region0: #{mlp_forward.1}
  #allocation0 [shape = 'u32[]', space=smem, size = 0x4, offset = 0x4, fixed_abs, tag = 'smem constant byte address 0x4 - core index']
  #allocation1 [shape = 'u32[72,128]{1,0:T(1,128)}', space=vmem, size = 0x9000, scoped, tag = 'internal scratch']
  %s0 = inlined_call_operand.vmem [shape: f32[8,128], index: 0, kind: input, shape index: {}]
  %s1 = inlined_call_operand.hbm [shape: bf16[128,128], index: 1, kind: input, shape index: {}]
  %s2 = inlined_call_operand.vmem [shape: f32[1,128], index: 2, kind: input, shape index: {}]
  %s3 = inlined_call_operand.hbm [shape: bf16[128,128], index: 3, kind: input, shape index: {}]
  %s4 = inlined_call_operand.vmem [shape: f32[1,128], index: 4, kind: input, shape index: {}]
  %s5 = inlined_call_operand.hbm [shape: bf16[128,128], index: 5, kind: input, shape index: {}]
  %s6 = inlined_call_operand.vmem [shape: f32[1,128], index: 6, kind: input, shape index: {}]
  %s7 = inlined_call_operand.hbm [shape: f32[8,128], index: 7, kind: output, shape index: {}]
  %s8 = sld [smem:[#allocation0]]
  $region50: #{mlp_forward.1} parent=0
    _
  %s10 = ssub.s32 1, %s8
  %s11 = scalar_select 0, %s10, %s8
  $region1: #{mlp_forward.1} parent=0
    #allocation2 [shape = 'u8[32768]{0}', space=vmem, size = 0x8000, scoped, tag = 'input window, operand 1, single buffered']
    #allocation3 [shape = 's32[1]{0}', space=sflag, size = 0x4, scoped, tag = 'scoped memory for mlp_forward.1']
    #allocation4 [shape = 's32[1]{0}', space=sflag, size = 0x4, scoped, tag = 'scoped memory for mlp_forward.1']
    #allocation5 [shape = 'u8[32768]{0}', space=vmem, size = 0x8000, scoped, tag = 'input window, operand 3, single buffered']
    #allocation6 [shape = 's32[1]{0}', space=sflag, size = 0x4, scoped, tag = 'scoped memory for mlp_forward.1']
    #allocation7 [shape = 'u8[32768]{0}', space=vmem, size = 0x8000, scoped, tag = 'input window, operand 5, single buffered']
    #allocation8 [shape = 'u8[4096]{0}', space=vmem, size = 0x1000, scoped, tag = 'output window, operand 0, single buffered']
    %12 = vsyncpa [#allocation3], 0
    %13 = vsyncpa [#allocation6], 0
    %14 = vsyncpa [#allocation4], 0
    // Predicated region
    $region2: #{mlp_forward.1} parent=1 // pred_check
      _
    $region3: #{mlp_forward.1} parent=1 // pred_check_branch
      %16 = sbr.rel (0) target = $region5
    $region4: #{mlp_forward.1} parent=1 // pred_region
      _
    $region5: #{mlp_forward.1} parent=1 // pred_fallthru
      _
    // Predicated region
    $region6: #{mlp_forward.1} parent=1 // pred_check
      _
    $region7: #{mlp_forward.1} parent=1 // pred_check_branch
      %18 = sbr.rel (0) target = $region9
    $region8: #{mlp_forward.1} parent=1 // pred_region
      %20 = vsyncadd [#allocation3], 0
      %s21 = sshll.u32 %s1, 4
      %s22 = int_to_ptr.hbm [resolvable:$true] %s21
      %s23 = sshll.u32 [#allocation2], 4
      %s24 = int_to_ptr.vmem [resolvable:$true] %s23
      %29 = dma.hbm_to_vmem [thread:$0]  %s22, 1024, %s24, [#allocation3], 64, 64, 4
    $region9: #{mlp_forward.1} parent=1 // pred_fallthru
      _
    // Predicated region
    $region10: #{mlp_forward.1} parent=1 // pred_check
      _
    $region11: #{mlp_forward.1} parent=1 // pred_check_branch
      %31 = sbr.rel (0) target = $region13
    $region12: #{mlp_forward.1} parent=1 // pred_region
      _
    $region13: #{mlp_forward.1} parent=1 // pred_fallthru
      _
    // Predicated region
    $region14: #{mlp_forward.1} parent=1 // pred_check
      _
    $region15: #{mlp_forward.1} parent=1 // pred_check_branch
      %33 = sbr.rel (0) target = $region17
    $region16: #{mlp_forward.1} parent=1 // pred_region
      %35 = vsyncadd [#allocation6], 0
      %s36 = sshll.u32 %s3, 4
      %s37 = int_to_ptr.hbm [resolvable:$true] %s36
      %s38 = sshll.u32 [#allocation5], 4
      %s39 = int_to_ptr.vmem [resolvable:$true] %s38
      %44 = dma.hbm_to_vmem [thread:$0]  %s37, 1024, %s39, [#allocation6], 64, 64, 4
    $region17: #{mlp_forward.1} parent=1 // pred_fallthru
      _
    // Predicated region
    $region18: #{mlp_forward.1} parent=1 // pred_check
      _
    $region19: #{mlp_forward.1} parent=1 // pred_check_branch
      %46 = sbr.rel (0) target = $region21
    $region20: #{mlp_forward.1} parent=1 // pred_region
      _
    $region21: #{mlp_forward.1} parent=1 // pred_fallthru
      _
    // Predicated region
    $region22: #{mlp_forward.1} parent=1 // pred_check
      _
    $region23: #{mlp_forward.1} parent=1 // pred_check_branch
      %48 = sbr.rel (0) target = $region25
    $region24: #{mlp_forward.1} parent=1 // pred_region
      %50 = vsyncadd [#allocation6], 0
      %s51 = sshll.u32 %s5, 4
      %s52 = int_to_ptr.hbm [resolvable:$true] %s51
      %s53 = sshll.u32 [#allocation7], 4
      %s54 = int_to_ptr.vmem [resolvable:$true] %s53
      %59 = dma.hbm_to_vmem [thread:$0]  %s52, 1024, %s54, [#allocation6], 64, 64, 4
    $region25: #{mlp_forward.1} parent=1 // pred_fallthru
      _
    // Predicated region
    $region26: #{mlp_forward.1} parent=1 // pred_check
      _
    $region27: #{mlp_forward.1} parent=1 // pred_check_branch
      %61 = sbr.rel (0) target = $region29
    $region28: #{mlp_forward.1} parent=1 // pred_region
      _
    $region29: #{mlp_forward.1} parent=1 // pred_fallthru
      _
    // Predicated region
    $region30: #{mlp_forward.1} parent=1 // pred_check
      _
    $region31: #{mlp_forward.1} parent=1 // pred_check_branch
      %63 = sbr.rel (0) target = $region33
    $region32: #{mlp_forward.1} parent=1 // pred_region
      %65 = dma.done [#allocation3], 1024
    $region33: #{mlp_forward.1} parent=1 // pred_fallthru
      _
    // Predicated region
    $region34: #{mlp_forward.1} parent=1 // pred_check
      _
    $region35: #{mlp_forward.1} parent=1 // pred_check_branch
      %67 = sbr.rel (0) target = $region37
    $region36: #{mlp_forward.1} parent=1 // pred_region
      %69 = dma.done [#allocation6], 1024
    $region37: #{mlp_forward.1} parent=1 // pred_fallthru
      _
    // Predicated region
    $region38: #{mlp_forward.1} parent=1 // pred_check
      _
    $region39: #{mlp_forward.1} parent=1 // pred_check_branch
      %71 = sbr.rel (0) target = $region41
    $region40: #{mlp_forward.1} parent=1 // pred_region
      %73 = dma.done [#allocation6], 1024
    $region41: #{mlp_forward.1} parent=1 // pred_fallthru
      _
    %v74 = vld [vmem:[%s0] sm:$0xff]
    %v75 = vld [vmem:[#allocation2] sm:$0xf]
    %v76 = vld [vmem:[#allocation2 + $0x4] sm:$0xf]
    %v77 = vld [vmem:[#allocation2 + $0x8] sm:$0xf]
    %v78 = vld [vmem:[#allocation2 + $0xc] sm:$0xf]
    %v79 = vld [vmem:[#allocation2 + $0x10] sm:$0xf]
    %v80 = vld [vmem:[#allocation2 + $0x14] sm:$0xf]
    %v81 = vld [vmem:[#allocation2 + $0x18] sm:$0xf]
    %v82 = vld [vmem:[#allocation2 + $0x1c] sm:$0xf]
    %v83 = vld [vmem:[#allocation2 + $0x20] sm:$0xf]
    %v84 = vld [vmem:[#allocation2 + $0x24] sm:$0xf]
    %v85 = vld [vmem:[#allocation2 + $0x28] sm:$0xf]
    %v86 = vld [vmem:[#allocation2 + $0x2c] sm:$0xf]
    %v87 = vld [vmem:[#allocation2 + $0x30] sm:$0xf]
    %v88 = vld [vmem:[#allocation2 + $0x34] sm:$0xf]
    %v89 = vld [vmem:[#allocation2 + $0x38] sm:$0xf]
    %v90 = vld [vmem:[#allocation2 + $0x3c] sm:$0xf]
    %v91 = vld [vmem:[%s2] sm:$0x1]
    %v92 = vpack.c.bf16 %v74, %v74
    %v94 = vperm.slane %v91, 0
    %v112 = vunpack.c.l.b16 %v75
    %v113 = vunpack.c.l.b16 %v76
    %v114 = vunpack.c.l.b16 %v77
    %v115 = vunpack.c.l.b16 %v78
    %v116 = vunpack.c.l.b16 %v79
    %v117 = vunpack.c.l.b16 %v80
    %v118 = vunpack.c.l.b16 %v81
    %v119 = vunpack.c.l.b16 %v82
    %v120 = vunpack.c.l.b16 %v83
    %v121 = vunpack.c.l.b16 %v84
    %v122 = vunpack.c.l.b16 %v85
    %v123 = vunpack.c.l.b16 %v86
    %v124 = vunpack.c.l.b16 %v87
    %v125 = vunpack.c.l.b16 %v88
    %v126 = vunpack.c.l.b16 %v89
    %v127 = vunpack.c.l.b16 %v90
    %v128 = vpack.c.b16 %v113, %v112
    %v129 = vpack.c.b16 %v115, %v114
    %v130 = vpack.c.b16 %v117, %v116
    %v131 = vpack.c.b16 %v119, %v118
    %v132 = vpack.c.b16 %v121, %v120
    %v133 = vpack.c.b16 %v123, %v122
    %v134 = vpack.c.b16 %v125, %v124
    %v135 = vpack.c.b16 %v127, %v126
    %144 = vmatpush.bf16.msra.mxu0 %v135
    %145 = vmatpush.bf16.msra.mxu0 %v134
    %146 = vmatpush.bf16.msra.mxu0 %v133
    %147 = vmatpush.bf16.msra.mxu0 %v132
    %148 = vmatpush.bf16.msra.mxu0 %v131
    %149 = vmatpush.bf16.msra.mxu0 %v130
    %150 = vmatpush.bf16.msra.mxu0 %v129
    %151 = vmatpush.bf16.msra.mxu0 %v128
    %152 = vmatmul.bf16.gmra.mxu0 %v92
    %v153 = vpop.f32.mrf.mxu0
    %v154 = vadd.f32 %v94, %v153
    %v155 = vpop.f32.mrf.mxu0
    %156 = vdwg.mxu0
    %v157 = vmax.f32 %v154, 0.0
    %v158 = vld [vmem:[#allocation5] sm:$0xf]
    %v159 = vld [vmem:[#allocation5 + $0x4] sm:$0xf]
    %v160 = vld [vmem:[#allocation5 + $0x8] sm:$0xf]
    %v161 = vld [vmem:[#allocation5 + $0xc] sm:$0xf]
    %v162 = vld [vmem:[#allocation5 + $0x10] sm:$0xf]
    %v163 = vld [vmem:[#allocation5 + $0x14] sm:$0xf]
    %v164 = vld [vmem:[#allocation5 + $0x18] sm:$0xf]
    %v165 = vld [vmem:[#allocation5 + $0x1c] sm:$0xf]
    %v166 = vld [vmem:[#allocation5 + $0x20] sm:$0xf]
    %v167 = vld [vmem:[#allocation5 + $0x24] sm:$0xf]
    %v168 = vld [vmem:[#allocation5 + $0x28] sm:$0xf]
    %v169 = vld [vmem:[#allocation5 + $0x2c] sm:$0xf]
    %v170 = vld [vmem:[#allocation5 + $0x30] sm:$0xf]
    %v171 = vld [vmem:[#allocation5 + $0x34] sm:$0xf]
    %v172 = vld [vmem:[#allocation5 + $0x38] sm:$0xf]
    %v173 = vld [vmem:[#allocation5 + $0x3c] sm:$0xf]
    %v174 = vld [vmem:[%s4] sm:$0x1]
    %v175 = vpack.c.bf16 %v157, %v157
    %v177 = vperm.slane %v174, 0
    %v195 = vunpack.c.l.b16 %v158
    %v196 = vunpack.c.l.b16 %v159
    %v197 = vunpack.c.l.b16 %v160
    %v198 = vunpack.c.l.b16 %v161
    %v199 = vunpack.c.l.b16 %v162
    %v200 = vunpack.c.l.b16 %v163
    %v201 = vunpack.c.l.b16 %v164
    %v202 = vunpack.c.l.b16 %v165
    %v203 = vunpack.c.l.b16 %v166
    %v204 = vunpack.c.l.b16 %v167
    %v205 = vunpack.c.l.b16 %v168
    %v206 = vunpack.c.l.b16 %v169
    %v207 = vunpack.c.l.b16 %v170
    %v208 = vunpack.c.l.b16 %v171
    %v209 = vunpack.c.l.b16 %v172
    %v210 = vunpack.c.l.b16 %v173
    %v211 = vpack.c.b16 %v196, %v195
    %v212 = vpack.c.b16 %v198, %v197
    %v213 = vpack.c.b16 %v200, %v199
    %v214 = vpack.c.b16 %v202, %v201
    %v215 = vpack.c.b16 %v204, %v203
    %v216 = vpack.c.b16 %v206, %v205
    %v217 = vpack.c.b16 %v208, %v207
    %v218 = vpack.c.b16 %v210, %v209
    %227 = vmatpush.bf16.msra.mxu0 %v218
    %228 = vmatpush.bf16.msra.mxu0 %v217
    %229 = vmatpush.bf16.msra.mxu0 %v216
    %230 = vmatpush.bf16.msra.mxu0 %v215
    %231 = vmatpush.bf16.msra.mxu0 %v214
    %232 = vmatpush.bf16.msra.mxu0 %v213
    %233 = vmatpush.bf16.msra.mxu0 %v212
    %234 = vmatpush.bf16.msra.mxu0 %v211
    %235 = vmatmul.bf16.gmra.mxu0 %v175
    %v236 = vpop.f32.mrf.mxu0
    %v237 = vadd.f32 %v177, %v236
    %v238 = vpop.f32.mrf.mxu0
    %239 = vdwg.mxu0
    %v240 = vmax.f32 %v237, 0.0
    %v241 = vld [vmem:[#allocation7] sm:$0xf]
    %v242 = vld [vmem:[#allocation7 + $0x4] sm:$0xf]
    %v243 = vld [vmem:[#allocation7 + $0x8] sm:$0xf]
    %v244 = vld [vmem:[#allocation7 + $0xc] sm:$0xf]
    %v245 = vld [vmem:[#allocation7 + $0x10] sm:$0xf]
    %v246 = vld [vmem:[#allocation7 + $0x14] sm:$0xf]
    %v247 = vld [vmem:[#allocation7 + $0x18] sm:$0xf]
    %v248 = vld [vmem:[#allocation7 + $0x1c] sm:$0xf]
    %v249 = vld [vmem:[#allocation7 + $0x20] sm:$0xf]
    %v250 = vld [vmem:[#allocation7 + $0x24] sm:$0xf]
    %v251 = vld [vmem:[#allocation7 + $0x28] sm:$0xf]
    %v252 = vld [vmem:[#allocation7 + $0x2c] sm:$0xf]
    %v253 = vld [vmem:[#allocation7 + $0x30] sm:$0xf]
    %v254 = vld [vmem:[#allocation7 + $0x34] sm:$0xf]
    %v255 = vld [vmem:[#allocation7 + $0x38] sm:$0xf]
    %v256 = vld [vmem:[#allocation7 + $0x3c] sm:$0xf]
    %v257 = vld [vmem:[%s6] sm:$0x1]
    %v258 = vpack.c.bf16 %v240, %v240
    %v260 = vperm.slane %v257, 0
    %v278 = vunpack.c.l.b16 %v241
    %v279 = vunpack.c.l.b16 %v242
    %v280 = vunpack.c.l.b16 %v243
    %v281 = vunpack.c.l.b16 %v244
    %v282 = vunpack.c.l.b16 %v245
    %v283 = vunpack.c.l.b16 %v246
    %v284 = vunpack.c.l.b16 %v247
    %v285 = vunpack.c.l.b16 %v248
    %v286 = vunpack.c.l.b16 %v249
    %v287 = vunpack.c.l.b16 %v250
    %v288 = vunpack.c.l.b16 %v251
    %v289 = vunpack.c.l.b16 %v252
    %v290 = vunpack.c.l.b16 %v253
    %v291 = vunpack.c.l.b16 %v254
    %v292 = vunpack.c.l.b16 %v255
    %v293 = vunpack.c.l.b16 %v256
    %v294 = vpack.c.b16 %v279, %v278
    %v295 = vpack.c.b16 %v281, %v280
    %v296 = vpack.c.b16 %v283, %v282
    %v297 = vpack.c.b16 %v285, %v284
    %v298 = vpack.c.b16 %v287, %v286
    %v299 = vpack.c.b16 %v289, %v288
    %v300 = vpack.c.b16 %v291, %v290
    %v301 = vpack.c.b16 %v293, %v292
    %310 = vmatpush.bf16.msra.mxu0 %v301
    %311 = vmatpush.bf16.msra.mxu0 %v300
    %312 = vmatpush.bf16.msra.mxu0 %v299
    %313 = vmatpush.bf16.msra.mxu0 %v298
    %314 = vmatpush.bf16.msra.mxu0 %v297
    %315 = vmatpush.bf16.msra.mxu0 %v296
    %316 = vmatpush.bf16.msra.mxu0 %v295
    %317 = vmatpush.bf16.msra.mxu0 %v294
    %318 = vmatmul.bf16.gmra.mxu0 %v258
    %v319 = vpop.f32.mrf.mxu0
    %v320 = vadd.f32 %v260, %v319
    %v321 = vpop.f32.mrf.mxu0
    %322 = vdwg.mxu0
    %v323 = vmax.f32 %v320, 0.0
    %324 = vst [vmem:[#allocation8] sm:$0xff] %v323
    // Predicated region
    $region42: #{mlp_forward.1} parent=1 // pred_check
      _
    $region43: #{mlp_forward.1} parent=1 // pred_check_branch
      %326 = sbr.rel (0) target = $region45
    $region44: #{mlp_forward.1} parent=1 // pred_region
      %328 = vsyncadd [#allocation4], 0
      %s330 = sshll.u32 [#allocation8], 4
      %s331 = int_to_ptr.vmem [resolvable:$true] %s330
      %s332 = sshll.u32 %s7, 4
      %s333 = int_to_ptr.hbm [resolvable:$true] %s332
      %335 = dma.vmem_to_hbm [thread:$0]  %s331, 128, %s333, [#allocation4]
    $region45: #{mlp_forward.1} parent=1 // pred_fallthru
      _
    // Predicated region
    $region46: #{mlp_forward.1} parent=1 // pred_check
      _
    $region47: #{mlp_forward.1} parent=1 // pred_check_branch
      %337 = sbr.rel (0) target = $region49
    $region48: #{mlp_forward.1} parent=1 // pred_region
      %339 = dma.done [#allocation4], 128
    $region49: #{mlp_forward.1} parent=1 // pred_fallthru
      _
    %340 = vsyncpa [#allocation3], 1
    %341 = vsyncpa [#allocation6], 1
    %342 = vsyncpa [#allocation4], 1

</llo_original>
